<compile_context>
chip_gen: v6e
topology: v6e:2x2x1
jax: 0.10.0
libtpu: 0.0.40
codegen_flags: <defaults>
</compile_context>

<pallas_src>
import jax
import jax.numpy as jnp
from jax.experimental import pallas as pl
from jax.experimental.pallas import tpu as pltpu


def _round_up(n: int, m: int) -> int:
    return ((n + m - 1) // m) * m


# ----------------------------------------------------------------------------
# Kernel
# ----------------------------------------------------------------------------
def dueling_dqn_kernel(x_ref, w1_ref, b1_ref, w2_ref, b2_ref,
                       wva_ref, bva_ref, wq_ref, bq_ref, out_ref):
    cdt = w1_ref.dtype  # MXU input dtype (f32 or bf16); accumulation is f32

    # fc1 + relu
    h = jnp.dot(x_ref[...], w1_ref[...], preferred_element_type=jnp.float32)
    h = jnp.maximum(h + b1_ref[...], 0.0).astype(cdt)

    # fc2 + relu
    h = jnp.dot(h, w2_ref[...], preferred_element_type=jnp.float32)
    h = jnp.maximum(h + b2_ref[...], 0.0).astype(cdt)

    # fused value/advantage hidden layer: [tile_b, 2*h3]
    va = jnp.dot(h, wva_ref[...], preferred_element_type=jnp.float32)
    va = jnp.maximum(va + bva_ref[...], 0.0).astype(cdt)

    # fused dueling head: q = v + a - mean(a) is already folded into (wq, bq),
    # so this matmul produces the final Q values directly.
    q = jnp.dot(va, wq_ref[...], preferred_element_type=jnp.float32) + bq_ref[...]
    out_ref[...] = q.astype(out_ref.dtype)


# ----------------------------------------------------------------------------
# Parameter preparation (head fusion + dueling-combine fold), done once.
# ----------------------------------------------------------------------------
def prepare_params(params, action_dim, out_pad, dtype=jnp.float32):
    w1, b1, w2, b2, wv, bv, wvo, bvo, wa, ba, wao, bao = params
    h3 = wv.shape[1]

    # First head layer: both branches in one matmul.
    w_va = jnp.concatenate([wv, wa], axis=1)            # [h2, 2*h3]
    b_va = jnp.concatenate([bv, ba], axis=1)            # [1, 2*h3]

    # Output head with the dueling combine folded in:
    #   q = relu_v @ (wvo * 1_A^T) + relu_a @ (wao - mean_cols(wao))
    #       + (bvo + bao - mean(bao))
    w_q = jnp.zeros((2 * h3, out_pad), jnp.float32)
    w_q = w_q.at[:h3, :action_dim].set(jnp.broadcast_to(wvo, (h3, action_dim)))
    w_q = w_q.at[h3:, :action_dim].set(wao - wao.mean(axis=1, keepdims=True))
    b_q = jnp.zeros((1, out_pad), jnp.float32)
    b_q = b_q.at[:, :action_dim].set(bvo + bao - bao.mean())

    # Weight matrices go to the compute dtype (bf16 halves HBM/VMEM traffic on
    # v6e/v7x); biases stay f32 (added to the f32 accumulator).
    cast = lambda w: w.astype(dtype)
    return (cast(w1), b1, cast(w2), b2, cast(w_va), b_va, cast(w_q), b_q)


# ----------------------------------------------------------------------------
# Tiling policy
# ----------------------------------------------------------------------------
_MIN_TILE = 16    # multiple of 16: valid sublane multiple for both f32 and bf16
_MAX_TILE = 1024  # ~85% of HBM roofline per the measured tile-size sweep


def _choose_tiling(batch, tile_b=None):
    if tile_b is not None:
        tile_b = _round_up(tile_b, _MIN_TILE)
        return tile_b, pl.cdiv(batch, tile_b)
    if batch <= 2 * _MIN_TILE:
        return _round_up(max(batch, 1), _MIN_TILE), 1
    # ~_MAX_TILE rows per tile, and an even number of tiles so the "parallel"
    # batch axis splits evenly across the two v7x TensorCores.
    n_tiles = max(2, pl.cdiv(batch, _MAX_TILE))
    if n_tiles % 2:
        n_tiles += 1
    tile_b = _round_up(pl.cdiv(batch, n_tiles), _MIN_TILE)
    return tile_b, n_tiles


# ----------------------------------------------------------------------------
# Wrapper
# ----------------------------------------------------------------------------
def dueling_dqn_forward(x, fused_params, action_dim, *, tile_b=None, out_dtype=None):
    w1, b1, w2, b2, w_va, b_va, w_q, b_q = fused_params
    B, state_dim = x.shape
    h1, h2, h3x2 = w1.shape[1], w2.shape[1], w_va.shape[1]
    out_pad = w_q.shape[1]
    dtype = w1.dtype
    if out_dtype is None:
        out_dtype = jnp.float32

    x = x.astype(dtype)
    tile_b, n_tiles = _choose_tiling(B, tile_b)
    b_pad = tile_b * n_tiles
    if b_pad != B:
        x = jnp.pad(x, ((0, b_pad - B), (0, 0)))

    act_spec = pl.BlockSpec((tile_b, state_dim), lambda i: (i, 0))
    out_spec = pl.BlockSpec((tile_b, out_pad), lambda i: (i, 0))

    def resident(arr):
        # Full-array block, constant index_map: stays VMEM-resident across the
        # grid.  (pipeline_mode=pl.Buffered(1) would additionally drop the
        # double buffer; only relevant on v7x once hidden sizes reach ~512+.)
        return pl.BlockSpec(arr.shape, lambda i: (0, 0))

    weights = (w1, b1, w2, b2, w_va, b_va, w_q, b_q)

    isz = lambda a: jnp.dtype(a.dtype).itemsize
    weight_bytes = sum(int(a.size) * isz(a) for a in weights)
    io_tile_bytes = 2 * tile_b * (state_dim * isz(x)
                                  + out_pad * jnp.dtype(out_dtype).itemsize)
    act_bytes = tile_b * (h1 + h2 + h3x2 + out_pad) * 4
    vmem_limit = int(min(2 * weight_bytes + 2 * io_tile_bytes + 2 * act_bytes
                         + (16 << 20),
                         64 << 20))  # clamp to the v7x per-core VMEM ceiling

    flops = 2 * b_pad * (state_dim * h1 + h1 * h2 + h2 * h3x2 + h3x2 * out_pad)
    bytes_accessed = int(b_pad * state_dim * isz(x)
                         + b_pad * out_pad * jnp.dtype(out_dtype).itemsize
                         + weight_bytes)

    out = pl.pallas_call(
        dueling_dqn_kernel,
        out_shape=jax.ShapeDtypeStruct((b_pad, out_pad), out_dtype),
        grid=(n_tiles,),
        in_specs=[act_spec] + [resident(w) for w in weights],
        out_specs=out_spec,
        compiler_params=pltpu.CompilerParams(
            dimension_semantics=("parallel",),
            vmem_limit_bytes=vmem_limit,
        ),
        cost_estimate=pl.CostEstimate(
            flops=flops, transcendentals=0, bytes_accessed=bytes_accessed),
    )(x, *weights)

    return out[:B, :action_dim]


# ----------------------------------------------------------------------------
# Synthetic parameters and pure-JAX reference
# ----------------------------------------------------------------------------
def init_params(key, state_dim, action_dim, h1, h2, h3):
    """PyTorch-style Linear init, transposed layout ([in, out] weights)."""
    keys = jax.random.split(key, 12)

    def linear(kw, kb, fan_in, fan_out):
        bound = 1.0 / jnp.sqrt(float(fan_in))
        w = jax.random.uniform(kw, (fan_in, fan_out), jnp.float32, -bound, bound)
        b = jax.random.uniform(kb, (1, fan_out), jnp.float32, -bound, bound)
        return w, b

    w1, b1 = linear(keys[0], keys[1], state_dim, h1)
    w2, b2 = linear(keys[2], keys[3], h1, h2)
    wv, bv = linear(keys[4], keys[5], h2, h3)
    wvo, bvo = linear(keys[6], keys[7], h3, 1)
    wa, ba = linear(keys[8], keys[9], h2, h3)
    wao, bao = linear(keys[10], keys[11], h3, action_dim)
    return (w1, b1, w2, b2, wv, bv, wvo, bvo, wa, ba, wao, bao)


def reference_forward(x, params):
    """Pure-JAX reference mirroring the PyTorch forward (unfused weights)."""
    (w1, b1, w2, b2, wv, bv, wvo, bvo, wa, ba, wao, bao) = params
    h = jax.nn.relu(x @ w1 + b1)
    h = jax.nn.relu(h @ w2 + b2)
    v = jax.nn.relu(h @ wv + bv) @ wvo + bvo
    a = jax.nn.relu(h @ wa + ba) @ wao + bao
    return v + (a - a.mean(axis=1, keepdims=True))


if __name__ == "__main__":
    # Small shapes consistent with the module's forward: x is [batch, state_dim].
    batch = 2
    state_dim = 16
    action_dim = 4
    hidden1 = hidden2 = hidden3 = 32

    key = jax.random.PRNGKey(0)
    k_x, k_p, k_x2 = jax.random.split(key, 3)
    x = jax.random.normal(k_x, (batch, state_dim), dtype=jnp.float32)
    params = init_params(k_p, state_dim, action_dim, hidden1, hidden2, hidden3)

    # Narrow output slab: the dueling combine is folded into the head weights,
    # so only action_dim lanes are needed; round up to a sublane multiple.
    out_pad = _round_up(action_dim, 8)

    # --- f32 path: tight-tolerance correctness check (single grid step) -----
    fused_f32 = prepare_params(params, action_dim, out_pad, dtype=jnp.float32)
    q = jax.block_until_ready(dueling_dqn_forward(x, fused_f32, action_dim))
    q_ref = reference_forward(x, params)
    assert q.shape == (batch, action_dim)
    assert jnp.allclose(q, q_ref, atol=1e-4, rtol=1e-4), "f32 mismatch (small batch)"

    # --- multi-tile grid path (batch padding + even grid), still f32 --------
    big_batch = 600
    x_big = jax.random.normal(k_x2, (big_batch, state_dim), dtype=jnp.float32)
    q_big = jax.block_until_ready(dueling_dqn_forward(x_big, fused_f32, action_dim))
    q_big_ref = reference_forward(x_big, params)
    assert q_big.shape == (big_batch, action_dim)
    assert jnp.allclose(q_big, q_big_ref, atol=1e-4, rtol=1e-4), "f32 mismatch (tiled)"

    # --- bf16 I/O path (halves HBM bytes on v6e/v7x; f32 accumulation) ------
    fused_bf16 = prepare_params(params, action_dim, out_pad, dtype=jnp.bfloat16)
    q_bf16 = jax.block_until_ready(
        dueling_dqn_forward(x_big, fused_bf16, action_dim, out_dtype=jnp.float32))
    assert q_bf16.shape == (big_batch, action_dim)
    assert jnp.allclose(q_bf16, q_big_ref, atol=5e-2, rtol=5e-2), "bf16 mismatch"

    print("KERNEL_OK")
</pallas_src>

<mosaic_0001>
module attributes {stable_mosaic.version = 11 : i64} {
  func.func @dueling_dqn_kernel(%arg0: i32, %arg1: memref<16x16xf32, #tpu.memory_space<vmem>>, %arg2: memref<16x32xf32, #tpu.memory_space<vmem>>, %arg3: memref<1x32xf32, #tpu.memory_space<vmem>>, %arg4: memref<32x32xf32, #tpu.memory_space<vmem>>, %arg5: memref<1x32xf32, #tpu.memory_space<vmem>>, %arg6: memref<32x64xf32, #tpu.memory_space<vmem>>, %arg7: memref<1x64xf32, #tpu.memory_space<vmem>>, %arg8: memref<64x8xf32, #tpu.memory_space<vmem>>, %arg9: memref<1x8xf32, #tpu.memory_space<vmem>>, %arg10: memref<16x8xf32, #tpu.memory_space<vmem>>) attributes {dimension_semantics = [#tpu.dimension_semantics<parallel>], iteration_bounds = array<i64: 1>, scalar_prefetch = 0 : i64, scratch_operands = 0 : i64, tpu.core_type = #tpu.core_type<tc>, window_params = [{transform_indices = @transform_0, window_bounds = array<i64: 16, 16>}, {pipeline_mode = #tpu.pipeline_mode<synchronous>, transform_indices = @transform_1, window_bounds = array<i64: 16, 32>}, {pipeline_mode = #tpu.pipeline_mode<synchronous>, transform_indices = @transform_2, window_bounds = array<i64: 1, 32>}, {pipeline_mode = #tpu.pipeline_mode<synchronous>, transform_indices = @transform_3, window_bounds = array<i64: 32, 32>}, {pipeline_mode = #tpu.pipeline_mode<synchronous>, transform_indices = @transform_4, window_bounds = array<i64: 1, 32>}, {pipeline_mode = #tpu.pipeline_mode<synchronous>, transform_indices = @transform_5, window_bounds = array<i64: 32, 64>}, {pipeline_mode = #tpu.pipeline_mode<synchronous>, transform_indices = @transform_6, window_bounds = array<i64: 1, 64>}, {pipeline_mode = #tpu.pipeline_mode<synchronous>, transform_indices = @transform_7, window_bounds = array<i64: 64, 8>}, {pipeline_mode = #tpu.pipeline_mode<synchronous>, transform_indices = @transform_8, window_bounds = array<i64: 1, 8>}, {transform_indices = @transform_9, window_bounds = array<i64: 16, 8>}]} {
    %c0 = arith.constant 0 : index
    %c0_0 = arith.constant 0 : index
    %0 = vector.load %arg1[%c0, %c0_0] : memref<16x16xf32, #tpu.memory_space<vmem>>, vector<16x16xf32>
    %c0_1 = arith.constant 0 : index
    %c0_2 = arith.constant 0 : index
    %1 = vector.load %arg2[%c0_1, %c0_2] : memref<16x32xf32, #tpu.memory_space<vmem>>, vector<16x32xf32>
    %cst = arith.constant dense<0.000000e+00> : vector<16x32xf32>
    %2 = tpu.matmul %0, %1, %cst {dimension_numbers = #tpu.dot_dimension_numbers<[1], [0], [0], [1], [0, 0, 1, 1], [], []>} : vector<16x16xf32>, vector<16x32xf32>, vector<16x32xf32> -> vector<16x32xf32>
    %c0_3 = arith.constant 0 : index
    %c0_4 = arith.constant 0 : index
    %3 = vector.load %arg3[%c0_3, %c0_4] : memref<1x32xf32, #tpu.memory_space<vmem>>, vector<1x32xf32>
    %4 = vector.broadcast %3 : vector<1x32xf32> to vector<16x32xf32>
    %5 = arith.addf %2, %4 : vector<16x32xf32>
    %cst_5 = arith.constant 0.000000e+00 : f32
    %6 = vector.broadcast %cst_5 : f32 to vector<16x32xf32>
    %7 = arith.maximumf %5, %6 : vector<16x32xf32>
    %c0_6 = arith.constant 0 : index
    %c0_7 = arith.constant 0 : index
    %8 = vector.load %arg4[%c0_6, %c0_7] : memref<32x32xf32, #tpu.memory_space<vmem>>, vector<32x32xf32>
    %cst_8 = arith.constant dense<0.000000e+00> : vector<16x32xf32>
    %9 = tpu.matmul %7, %8, %cst_8 {dimension_numbers = #tpu.dot_dimension_numbers<[1], [0], [0], [1], [0, 0, 1, 1], [], []>} : vector<16x32xf32>, vector<32x32xf32>, vector<16x32xf32> -> vector<16x32xf32>
    %c0_9 = arith.constant 0 : index
    %c0_10 = arith.constant 0 : index
    %10 = vector.load %arg5[%c0_9, %c0_10] : memref<1x32xf32, #tpu.memory_space<vmem>>, vector<1x32xf32>
    %11 = vector.broadcast %10 : vector<1x32xf32> to vector<16x32xf32>
    %12 = arith.addf %9, %11 : vector<16x32xf32>
    %cst_11 = arith.constant 0.000000e+00 : f32
    %13 = vector.broadcast %cst_11 : f32 to vector<16x32xf32>
    %14 = arith.maximumf %12, %13 : vector<16x32xf32>
    %c0_12 = arith.constant 0 : index
    %c0_13 = arith.constant 0 : index
    %15 = vector.load %arg6[%c0_12, %c0_13] : memref<32x64xf32, #tpu.memory_space<vmem>>, vector<32x64xf32>
    %cst_14 = arith.constant dense<0.000000e+00> : vector<16x64xf32>
    %16 = tpu.matmul %14, %15, %cst_14 {dimension_numbers = #tpu.dot_dimension_numbers<[1], [0], [0], [1], [0, 0, 1, 1], [], []>} : vector<16x32xf32>, vector<32x64xf32>, vector<16x64xf32> -> vector<16x64xf32>
    %c0_15 = arith.constant 0 : index
    %c0_16 = arith.constant 0 : index
    %17 = vector.load %arg7[%c0_15, %c0_16] : memref<1x64xf32, #tpu.memory_space<vmem>>, vector<1x64xf32>
    %18 = vector.broadcast %17 : vector<1x64xf32> to vector<16x64xf32>
    %19 = arith.addf %16, %18 : vector<16x64xf32>
    %cst_17 = arith.constant 0.000000e+00 : f32
    %20 = vector.broadcast %cst_17 : f32 to vector<16x64xf32>
    %21 = arith.maximumf %19, %20 : vector<16x64xf32>
    %c0_18 = arith.constant 0 : index
    %c0_19 = arith.constant 0 : index
    %22 = vector.load %arg8[%c0_18, %c0_19] : memref<64x8xf32, #tpu.memory_space<vmem>>, vector<64x8xf32>
    %cst_20 = arith.constant dense<0.000000e+00> : vector<16x8xf32>
    %23 = tpu.matmul %21, %22, %cst_20 {dimension_numbers = #tpu.dot_dimension_numbers<[1], [0], [0], [1], [0, 0, 1, 1], [], []>} : vector<16x64xf32>, vector<64x8xf32>, vector<16x8xf32> -> vector<16x8xf32>
    %c0_21 = arith.constant 0 : index
    %c0_22 = arith.constant 0 : index
    %24 = vector.load %arg9[%c0_21, %c0_22] : memref<1x8xf32, #tpu.memory_space<vmem>>, vector<1x8xf32>
    %25 = vector.broadcast %24 : vector<1x8xf32> to vector<16x8xf32>
    %26 = arith.addf %23, %25 : vector<16x8xf32>
    %c0_23 = arith.constant 0 : index
    %c0_24 = arith.constant 0 : index
    %27 = vector.load %arg10[%c0_23, %c0_24] : memref<16x8xf32, #tpu.memory_space<vmem>>, vector<16x8xf32>
    tpu.vector_store %arg10[%c0_23, %c0_24], %26 {strides = array<i32>} : memref<16x8xf32, #tpu.memory_space<vmem>>, vector<16x8xf32>,
    return
  }
  func.func @transform_0(%arg0: i32) -> (i32, i32) {
    %c0_i32 = arith.constant 0 : i32
    %c0_i32_0 = arith.constant 0 : i32
    return %arg0, %c0_i32 : i32, i32
  }
  func.func @transform_1(%arg0: i32) -> (i32, i32) {
    %c0_i32 = arith.constant 0 : i32
    %c0_i32_0 = arith.constant 0 : i32
    %c0_i32_1 = arith.constant 0 : i32
    return %c0_i32, %c0_i32_0 : i32, i32
  }
  func.func @transform_2(%arg0: i32) -> (i32, i32) {
    %c0_i32 = arith.constant 0 : i32
    %c0_i32_0 = arith.constant 0 : i32
    %c0_i32_1 = arith.constant 0 : i32
    return %c0_i32, %c0_i32_0 : i32, i32
  }
  func.func @transform_3(%arg0: i32) -> (i32, i32) {
    %c0_i32 = arith.constant 0 : i32
    %c0_i32_0 = arith.constant 0 : i32
    %c0_i32_1 = arith.constant 0 : i32
    return %c0_i32, %c0_i32_0 : i32, i32
  }
  func.func @transform_4(%arg0: i32) -> (i32, i32) {
    %c0_i32 = arith.constant 0 : i32
    %c0_i32_0 = arith.constant 0 : i32
    %c0_i32_1 = arith.constant 0 : i32
    return %c0_i32, %c0_i32_0 : i32, i32
  }
  func.func @transform_5(%arg0: i32) -> (i32, i32) {
    %c0_i32 = arith.constant 0 : i32
    %c0_i32_0 = arith.constant 0 : i32
    %c0_i32_1 = arith.constant 0 : i32
    return %c0_i32, %c0_i32_0 : i32, i32
  }
  func.func @transform_6(%arg0: i32) -> (i32, i32) {
    %c0_i32 = arith.constant 0 : i32
    %c0_i32_0 = arith.constant 0 : i32
    %c0_i32_1 = arith.constant 0 : i32
    return %c0_i32, %c0_i32_0 : i32, i32
  }
  func.func @transform_7(%arg0: i32) -> (i32, i32) {
    %c0_i32 = arith.constant 0 : i32
    %c0_i32_0 = arith.constant 0 : i32
    %c0_i32_1 = arith.constant 0 : i32
    return %c0_i32, %c0_i32_0 : i32, i32
  }
  func.func @transform_8(%arg0: i32) -> (i32, i32) {
    %c0_i32 = arith.constant 0 : i32
    %c0_i32_0 = arith.constant 0 : i32
    %c0_i32_1 = arith.constant 0 : i32
    return %c0_i32, %c0_i32_0 : i32, i32
  }
  func.func @transform_9(%arg0: i32) -> (i32, i32) {
    %c0_i32 = arith.constant 0 : i32
    %c0_i32_0 = arith.constant 0 : i32
    return %arg0, %c0_i32 : i32, i32
  }
}

</mosaic_0001>

<llo_original>
// kernel: tpu_custom_call.1
$region0: #{tpu_custom_call.1}
  #allocation0 [shape = 'u32[]', space=smem, size = 0x4, offset = 0x4, fixed_abs, tag = 'smem constant byte address 0x4 - core index']
  #allocation1 [shape = 'u32[144,128]{1,0:T(1,128)}', space=vmem, size = 0x12000, scoped, tag = 'internal scratch']
  %s0 = inlined_call_operand.hbm [shape: f32[16,16], index: 0, kind: input, shape index: {}]
  %s1 = inlined_call_operand.hbm [shape: f32[16,32], index: 1, kind: input, shape index: {}]
  %s2 = inlined_call_operand.vmem [shape: f32[1,32], index: 2, kind: input, shape index: {}]
  %s3 = inlined_call_operand.vmem [shape: f32[32,32], index: 3, kind: input, shape index: {}]
  %s4 = inlined_call_operand.vmem [shape: f32[1,32], index: 4, kind: input, shape index: {}]
  %s5 = inlined_call_operand.vmem [shape: f32[32,64], index: 5, kind: input, shape index: {}]
  %s6 = inlined_call_operand.vmem [shape: f32[1,64], index: 6, kind: input, shape index: {}]
  %s7 = inlined_call_operand.vmem [shape: f32[64,8], index: 7, kind: input, shape index: {}]
  %s8 = inlined_call_operand.vmem [shape: f32[1,8], index: 8, kind: input, shape index: {}]
  %s9 = inlined_call_operand.vmem [shape: f32[16,8], index: 9, kind: output, shape index: {}]
  %s10 = sld [smem:[#allocation0]]
  $region54: #{tpu_custom_call.1} parent=0
    _
  %s12 = ssub.s32 1, %s10
  %s13 = scalar_select 0, %s12, %s10
  $region1: #{tpu_custom_call.1} parent=0
    #allocation2 [shape = 'u8[8192]{0}', space=vmem, size = 0x2000, scoped, tag = 'input window, operand 0, single buffered']
    #allocation3 [shape = 's32[1]{0}', space=sflag, size = 0x4, scoped, tag = 'scoped memory for tpu_custom_call.1']
    #allocation4 [shape = 'u8[8192]{0}', space=vmem, size = 0x2000, scoped, tag = 'input window, operand 1, single buffered']
    #allocation5 [shape = 's32[1]{0}', space=sflag, size = 0x4, scoped, tag = 'scoped memory for tpu_custom_call.1']
    %14 = vsyncpa [#allocation3], 0
    %15 = vsyncpa [#allocation5], 0
    // Predicated region
    $region2: #{tpu_custom_call.1} parent=1 // pred_check
      _
    $region3: #{tpu_custom_call.1} parent=1 // pred_check_branch
      %17 = sbr.rel (0) target = $region5
    $region4: #{tpu_custom_call.1} parent=1 // pred_region
      %s19 = ssub.s32 256, 256
      %20 = vsyncadd [#allocation3], %s19
      %s21 = sshll.u32 [#allocation2], 4
      %s22 = int_to_ptr.vmem [resolvable:$true] %s21
      %27 = dma.hbm_to_vmem [thread:$0]  %s0, 256, %s22, [#allocation3], 128, 128, 8
    $region5: #{tpu_custom_call.1} parent=1 // pred_fallthru
      _
    // Predicated region
    $region6: #{tpu_custom_call.1} parent=1 // pred_check
      _
    $region7: #{tpu_custom_call.1} parent=1 // pred_check_branch
      %29 = sbr.rel (0) target = $region9
    $region8: #{tpu_custom_call.1} parent=1 // pred_region
      %s31 = ssub.s32 256, 256
      %32 = vsyncadd [#allocation5], %s31
      %s33 = sshll.u32 [#allocation4], 4
      %s34 = int_to_ptr.vmem [resolvable:$true] %s33
      %39 = dma.hbm_to_vmem [thread:$0]  %s1, 256, %s34, [#allocation5], 128, 128, 8
    $region9: #{tpu_custom_call.1} parent=1 // pred_fallthru
      _
    // Predicated region
    $region10: #{tpu_custom_call.1} parent=1 // pred_check
      _
    $region11: #{tpu_custom_call.1} parent=1 // pred_check_branch
      %41 = sbr.rel (0) target = $region13
    $region12: #{tpu_custom_call.1} parent=1 // pred_region
      _
    $region13: #{tpu_custom_call.1} parent=1 // pred_fallthru
      _
    // Predicated region
    $region14: #{tpu_custom_call.1} parent=1 // pred_check
      _
    $region15: #{tpu_custom_call.1} parent=1 // pred_check_branch
      %43 = sbr.rel (0) target = $region17
    $region16: #{tpu_custom_call.1} parent=1 // pred_region
      _
    $region17: #{tpu_custom_call.1} parent=1 // pred_fallthru
      _
    // Predicated region
    $region18: #{tpu_custom_call.1} parent=1 // pred_check
      _
    $region19: #{tpu_custom_call.1} parent=1 // pred_check_branch
      %45 = sbr.rel (0) target = $region21
    $region20: #{tpu_custom_call.1} parent=1 // pred_region
      _
    $region21: #{tpu_custom_call.1} parent=1 // pred_fallthru
      _
    // Predicated region
    $region22: #{tpu_custom_call.1} parent=1 // pred_check
      _
    $region23: #{tpu_custom_call.1} parent=1 // pred_check_branch
      %47 = sbr.rel (0) target = $region25
    $region24: #{tpu_custom_call.1} parent=1 // pred_region
      _
    $region25: #{tpu_custom_call.1} parent=1 // pred_fallthru
      _
    // Predicated region
    $region26: #{tpu_custom_call.1} parent=1 // pred_check
      _
    $region27: #{tpu_custom_call.1} parent=1 // pred_check_branch
      %49 = sbr.rel (0) target = $region29
    $region28: #{tpu_custom_call.1} parent=1 // pred_region
      _
    $region29: #{tpu_custom_call.1} parent=1 // pred_fallthru
      _
    // Predicated region
    $region30: #{tpu_custom_call.1} parent=1 // pred_check
      _
    $region31: #{tpu_custom_call.1} parent=1 // pred_check_branch
      %51 = sbr.rel (0) target = $region33
    $region32: #{tpu_custom_call.1} parent=1 // pred_region
      _
    $region33: #{tpu_custom_call.1} parent=1 // pred_fallthru
      _
    // Predicated region
    $region34: #{tpu_custom_call.1} parent=1 // pred_check
      _
    $region35: #{tpu_custom_call.1} parent=1 // pred_check_branch
      %53 = sbr.rel (0) target = $region37
    $region36: #{tpu_custom_call.1} parent=1 // pred_region
      _
    $region37: #{tpu_custom_call.1} parent=1 // pred_fallthru
      _
    // Predicated region
    $region38: #{tpu_custom_call.1} parent=1 // pred_check
      _
    $region39: #{tpu_custom_call.1} parent=1 // pred_check_branch
      %55 = sbr.rel (0) target = $region41
    $region40: #{tpu_custom_call.1} parent=1 // pred_region
      %56 = dma.done [#allocation3], 256
    $region41: #{tpu_custom_call.1} parent=1 // pred_fallthru
      _
    // Predicated region
    $region42: #{tpu_custom_call.1} parent=1 // pred_check
      _
    $region43: #{tpu_custom_call.1} parent=1 // pred_check_branch
      %58 = sbr.rel (0) target = $region45
    $region44: #{tpu_custom_call.1} parent=1 // pred_region
      %59 = dma.done [#allocation5], 256
    $region45: #{tpu_custom_call.1} parent=1 // pred_fallthru
      _
    %v60 = vld [vmem:[#allocation2] sm:$0xff]
    %v61 = vld [vmem:[#allocation2 + $0x8] sm:$0xff]
    %v62 = vld [vmem:[#allocation4] sm:$0xff]
    %v63 = vld [vmem:[#allocation4 + $0x8] sm:$0xff]
    %v64 = vld [vmem:[%s2] sm:$0x1]
    %v66 = vlaneseq
    %v67 = vshrl.u32 %v66, 7
    %v68 = vsub.s32 0, %v67
    %v69 = vrot.slane %v64, %v68
    %vm71 = vcmask 130048
    %v73 = vsel %vm71, %v60, 0
    %v76 = vsel %vm71, %v61, 0
    %78 = vmatprep.subr.mxu0 0.0
    %79 = vmatpush1.msra.mxu0 0.0
    %80 = vmatprep.subr.mxu0 0.0
    %81 = vmatpush1.msra.mxu0 0.0
    %82 = vmatprep.subr.mxu0 0.0
    %83 = vmatpush1.msra.mxu0 0.0
    %84 = vmatprep.subr.mxu0 0.0
    %85 = vmatpush1.msra.mxu0 0.0
    %86 = vmatprep.subr.mxu0 0.0
    %87 = vmatpush1.msra.mxu0 0.0
    %88 = vmatprep.subr.mxu0 0.0
    %89 = vmatpush1.msra.mxu0 0.0
    %90 = vmatprep.subr.mxu0 0.0
    %91 = vmatpush1.msra.mxu0 0.0
    %92 = vmatprep.subr.mxu0 0.0
    %93 = vmatpush1.msra.mxu0 0.0
    %94 = vmatprep.subr.mxu0 0.0
    %95 = vmatpush1.msra.mxu0 0.0
    %96 = vmatprep.subr.mxu0 0.0
    %97 = vmatpush1.msra.mxu0 0.0
    %98 = vmatprep.subr.mxu0 0.0
    %99 = vmatpush1.msra.mxu0 0.0
    %100 = vmatprep.subr.mxu0 0.0
    %101 = vmatpush1.msra.mxu0 0.0
    %102 = vmatprep.subr.mxu0 0.0
    %103 = vmatpush1.msra.mxu0 0.0
    %104 = vmatprep.subr.mxu0 0.0
    %105 = vmatpush1.msra.mxu0 0.0
    %106 = vmatprep.subr.mxu0 0.0
    %107 = vmatpush1.msra.mxu0 %v63
    %108 = vmatprep.subr.mxu0 0.0
    %109 = vmatpush1.msra.mxu0 %v62
    %110 = vmatprep.subr.mxu0 0.0
    %111 = vmatpush2.msra.mxu0 0.0
    %112 = vmatprep.subr.mxu0 0.0
    %113 = vmatpush2.msra.mxu0 0.0
    %114 = vmatprep.subr.mxu0 0.0
    %115 = vmatpush2.msra.mxu0 0.0
    %116 = vmatprep.subr.mxu0 0.0
    %117 = vmatpush2.msra.mxu0 0.0
    %118 = vmatprep.subr.mxu0 0.0
    %119 = vmatpush2.msra.mxu0 0.0
    %120 = vmatprep.subr.mxu0 0.0
    %121 = vmatpush2.msra.mxu0 0.0
    %122 = vmatprep.subr.mxu0 0.0
    %123 = vmatpush2.msra.mxu0 0.0
    %124 = vmatprep.subr.mxu0 0.0
    %125 = vmatpush2.msra.mxu0 0.0
    %126 = vmatprep.subr.mxu0 0.0
    %127 = vmatpush2.msra.mxu0 0.0
    %128 = vmatprep.subr.mxu0 0.0
    %129 = vmatpush2.msra.mxu0 0.0
    %130 = vmatprep.subr.mxu0 0.0
    %131 = vmatpush2.msra.mxu0 0.0
    %132 = vmatprep.subr.mxu0 0.0
    %133 = vmatpush2.msra.mxu0 0.0
    %134 = vmatprep.subr.mxu0 0.0
    %135 = vmatpush2.msra.mxu0 0.0
    %136 = vmatprep.subr.mxu0 0.0
    %137 = vmatpush2.msra.mxu0 0.0
    %138 = vmatprep.subr.mxu0 0.0
    %139 = vmatpush2.msra.mxu0 0.0
    %140 = vmatprep.subr.mxu0 0.0
    %141 = vmatpush2.msra.mxu0 0.0
    %142 = vmatprep.mubr.f32.mxu0 0.0
    %143 = vmatmul.mubr.f32.gmra.mxu0 %v73
    %v144 = vpop.f32.mrf.mxu0
    %v145 = vadd.f32 %v69, %v144
    %v146 = vpop.f32.mrf.mxu0
    %147 = vmatprep.mubr.f32.mxu0 0.0
    %148 = vmatmul.mubr.f32.gmra.mxu0 %v76
    %v149 = vpop.f32.mrf.mxu0
    %v150 = vadd.f32 %v69, %v149
    %v151 = vpop.f32.mrf.mxu0
    %152 = vdwg.mxu0
    %v153 = vmax.f32 %v145, 0.0
    %v154 = vmax.f32 %v150, 0.0
    %v155 = vld [vmem:[%s3] sm:$0xff]
    %v156 = vld [vmem:[%s3 + $0x8] sm:$0xff]
    %v157 = vld [vmem:[%s3 + $0x10] sm:$0xff]
    %v158 = vld [vmem:[%s3 + $0x18] sm:$0xff]
    %v159 = vld [vmem:[%s4] sm:$0x1]
    %v161 = vlaneseq
    %v162 = vshrl.u32 %v161, 7
    %v163 = vsub.s32 0, %v162
    %v164 = vrot.slane %v159, %v163
    %vm166 = vcmask 261120
    %v168 = vsel %vm166, %v153, 0
    %v171 = vsel %vm166, %v154, 0
    %173 = vmatprep.subr.mxu0 0.0
    %174 = vmatpush1.msra.mxu0 0.0
    %175 = vmatprep.subr.mxu0 0.0
    %176 = vmatpush1.msra.mxu0 0.0
    %177 = vmatprep.subr.mxu0 0.0
    %178 = vmatpush1.msra.mxu0 0.0
    %179 = vmatprep.subr.mxu0 0.0
    %180 = vmatpush1.msra.mxu0 0.0
    %181 = vmatprep.subr.mxu0 0.0
    %182 = vmatpush1.msra.mxu0 0.0
    %183 = vmatprep.subr.mxu0 0.0
    %184 = vmatpush1.msra.mxu0 0.0
    %185 = vmatprep.subr.mxu0 0.0
    %186 = vmatpush1.msra.mxu0 0.0
    %187 = vmatprep.subr.mxu0 0.0
    %188 = vmatpush1.msra.mxu0 0.0
    %189 = vmatprep.subr.mxu0 0.0
    %190 = vmatpush1.msra.mxu0 0.0
    %191 = vmatprep.subr.mxu0 0.0
    %192 = vmatpush1.msra.mxu0 0.0
    %193 = vmatprep.subr.mxu0 0.0
    %194 = vmatpush1.msra.mxu0 0.0
    %195 = vmatprep.subr.mxu0 0.0
    %196 = vmatpush1.msra.mxu0 0.0
    %197 = vmatprep.subr.mxu0 0.0
    %198 = vmatpush1.msra.mxu0 %v158
    %199 = vmatprep.subr.mxu0 0.0
    %200 = vmatpush1.msra.mxu0 %v157
    %201 = vmatprep.subr.mxu0 0.0
    %202 = vmatpush1.msra.mxu0 %v156
    %203 = vmatprep.subr.mxu0 0.0
    %204 = vmatpush1.msra.mxu0 %v155
    %205 = vmatprep.subr.mxu0 0.0
    %206 = vmatpush2.msra.mxu0 0.0
    %207 = vmatprep.subr.mxu0 0.0
    %208 = vmatpush2.msra.mxu0 0.0
    %209 = vmatprep.subr.mxu0 0.0
    %210 = vmatpush2.msra.mxu0 0.0
    %211 = vmatprep.subr.mxu0 0.0
    %212 = vmatpush2.msra.mxu0 0.0
    %213 = vmatprep.subr.mxu0 0.0
    %214 = vmatpush2.msra.mxu0 0.0
    %215 = vmatprep.subr.mxu0 0.0
    %216 = vmatpush2.msra.mxu0 0.0
    %217 = vmatprep.subr.mxu0 0.0
    %218 = vmatpush2.msra.mxu0 0.0
    %219 = vmatprep.subr.mxu0 0.0
    %220 = vmatpush2.msra.mxu0 0.0
    %221 = vmatprep.subr.mxu0 0.0
    %222 = vmatpush2.msra.mxu0 0.0
    %223 = vmatprep.subr.mxu0 0.0
    %224 = vmatpush2.msra.mxu0 0.0
    %225 = vmatprep.subr.mxu0 0.0
    %226 = vmatpush2.msra.mxu0 0.0
    %227 = vmatprep.subr.mxu0 0.0
    %228 = vmatpush2.msra.mxu0 0.0
    %229 = vmatprep.subr.mxu0 0.0
    %230 = vmatpush2.msra.mxu0 0.0
    %231 = vmatprep.subr.mxu0 0.0
    %232 = vmatpush2.msra.mxu0 0.0
    %233 = vmatprep.subr.mxu0 0.0
    %234 = vmatpush2.msra.mxu0 0.0
    %235 = vmatprep.subr.mxu0 0.0
    %236 = vmatpush2.msra.mxu0 0.0
    %237 = vmatprep.mubr.f32.mxu0 0.0
    %238 = vmatmul.mubr.f32.gmra.mxu0 %v168
    %v239 = vpop.f32.mrf.mxu0
    %v240 = vadd.f32 %v164, %v239
    %v241 = vpop.f32.mrf.mxu0
    %242 = vmatprep.mubr.f32.mxu0 0.0
    %243 = vmatmul.mubr.f32.gmra.mxu0 %v171
    %v244 = vpop.f32.mrf.mxu0
    %v245 = vadd.f32 %v164, %v244
    %v246 = vpop.f32.mrf.mxu0
    %247 = vdwg.mxu0
    %v248 = vmax.f32 %v240, 0.0
    %v249 = vmax.f32 %v245, 0.0
    %v250 = vld [vmem:[%s5] sm:$0xff]
    %v251 = vld [vmem:[%s5 + $0x8] sm:$0xff]
    %v252 = vld [vmem:[%s5 + $0x10] sm:$0xff]
    %v253 = vld [vmem:[%s5 + $0x18] sm:$0xff]
    %v254 = vld [vmem:[%s6] sm:$0x1]
    %v256 = vlaneseq
    %v257 = vshrl.u32 %v256, 7
    %v258 = vsub.s32 0, %v257
    %v259 = vrot.slane %v254, %v258
    %v262 = vsel %vm166, %v248, 0
    %v265 = vsel %vm166, %v249, 0
    %267 = vmatprep.subr.mxu0 0.0
    %268 = vmatpush1.msra.mxu0 0.0
    %269 = vmatprep.subr.mxu0 0.0
    %270 = vmatpush1.msra.mxu0 0.0
    %271 = vmatprep.subr.mxu0 0.0
    %272 = vmatpush1.msra.mxu0 0.0
    %273 = vmatprep.subr.mxu0 0.0
    %274 = vmatpush1.msra.mxu0 0.0
    %275 = vmatprep.subr.mxu0 0.0
    %276 = vmatpush1.msra.mxu0 0.0
    %277 = vmatprep.subr.mxu0 0.0
    %278 = vmatpush1.msra.mxu0 0.0
    %279 = vmatprep.subr.mxu0 0.0
    %280 = vmatpush1.msra.mxu0 0.0
    %281 = vmatprep.subr.mxu0 0.0
    %282 = vmatpush1.msra.mxu0 0.0
    %283 = vmatprep.subr.mxu0 0.0
    %284 = vmatpush1.msra.mxu0 0.0
    %285 = vmatprep.subr.mxu0 0.0
    %286 = vmatpush1.msra.mxu0 0.0
    %287 = vmatprep.subr.mxu0 0.0
    %288 = vmatpush1.msra.mxu0 0.0
    %289 = vmatprep.subr.mxu0 0.0
    %290 = vmatpush1.msra.mxu0 0.0
    %291 = vmatprep.subr.mxu0 0.0
    %292 = vmatpush1.msra.mxu0 %v253
    %293 = vmatprep.subr.mxu0 0.0
    %294 = vmatpush1.msra.mxu0 %v252
    %295 = vmatprep.subr.mxu0 0.0
    %296 = vmatpush1.msra.mxu0 %v251
    %297 = vmatprep.subr.mxu0 0.0
    %298 = vmatpush1.msra.mxu0 %v250
    %299 = vmatprep.subr.mxu0 0.0
    %300 = vmatpush2.msra.mxu0 0.0
    %301 = vmatprep.subr.mxu0 0.0
    %302 = vmatpush2.msra.mxu0 0.0
    %303 = vmatprep.subr.mxu0 0.0
    %304 = vmatpush2.msra.mxu0 0.0
    %305 = vmatprep.subr.mxu0 0.0
    %306 = vmatpush2.msra.mxu0 0.0
    %307 = vmatprep.subr.mxu0 0.0
    %308 = vmatpush2.msra.mxu0 0.0
    %309 = vmatprep.subr.mxu0 0.0
    %310 = vmatpush2.msra.mxu0 0.0
    %311 = vmatprep.subr.mxu0 0.0
    %312 = vmatpush2.msra.mxu0 0.0
    %313 = vmatprep.subr.mxu0 0.0
    %314 = vmatpush2.msra.mxu0 0.0
    %315 = vmatprep.subr.mxu0 0.0
    %316 = vmatpush2.msra.mxu0 0.0
    %317 = vmatprep.subr.mxu0 0.0
    %318 = vmatpush2.msra.mxu0 0.0
    %319 = vmatprep.subr.mxu0 0.0
    %320 = vmatpush2.msra.mxu0 0.0
    %321 = vmatprep.subr.mxu0 0.0
    %322 = vmatpush2.msra.mxu0 0.0
    %323 = vmatprep.subr.mxu0 0.0
    %324 = vmatpush2.msra.mxu0 0.0
    %325 = vmatprep.subr.mxu0 0.0
    %326 = vmatpush2.msra.mxu0 0.0
    %327 = vmatprep.subr.mxu0 0.0
    %328 = vmatpush2.msra.mxu0 0.0
    %329 = vmatprep.subr.mxu0 0.0
    %330 = vmatpush2.msra.mxu0 0.0
    %331 = vmatprep.mubr.f32.mxu0 0.0
    %332 = vmatmul.mubr.f32.gmra.mxu0 %v262
    %v333 = vpop.f32.mrf.mxu0
    %v334 = vadd.f32 %v259, %v333
    %v335 = vpop.f32.mrf.mxu0
    %336 = vmatprep.mubr.f32.mxu0 0.0
    %337 = vmatmul.mubr.f32.gmra.mxu0 %v265
    %v338 = vpop.f32.mrf.mxu0
    %v339 = vadd.f32 %v259, %v338
    %v340 = vpop.f32.mrf.mxu0
    %341 = vdwg.mxu0
    %v342 = vmax.f32 %v334, 0.0
    %v343 = vmax.f32 %v339, 0.0
    %v344 = vld [vmem:[%s7] sm:$0xff]
    %v345 = vld [vmem:[%s7 + $0x8] sm:$0xff]
    %v346 = vld [vmem:[%s7 + $0x10] sm:$0xff]
    %v347 = vld [vmem:[%s7 + $0x18] sm:$0xff]
    %v348 = vld [vmem:[%s7 + $0x20] sm:$0xff]
    %v349 = vld [vmem:[%s7 + $0x28] sm:$0xff]
    %v350 = vld [vmem:[%s7 + $0x30] sm:$0xff]
    %v351 = vld [vmem:[%s7 + $0x38] sm:$0xff]
    %v352 = vld [vmem:[%s8] sm:$0x1]
    %v354 = vlaneseq
    %v355 = vshrl.u32 %v354, 7
    %v356 = vsub.s32 0, %v355
    %v357 = vrot.slane %v352, %v356
    %vm359 = vcmask 523264
    %v361 = vsel %vm359, %v342, 0
    %v364 = vsel %vm359, %v343, 0
    %366 = vmatprep.subr.mxu0 0.0
    %367 = vmatpush1.msra.mxu0 0.0
    %368 = vmatprep.subr.mxu0 0.0
    %369 = vmatpush1.msra.mxu0 0.0
    %370 = vmatprep.subr.mxu0 0.0
    %371 = vmatpush1.msra.mxu0 0.0
    %372 = vmatprep.subr.mxu0 0.0
    %373 = vmatpush1.msra.mxu0 0.0
    %374 = vmatprep.subr.mxu0 0.0
    %375 = vmatpush1.msra.mxu0 0.0
    %376 = vmatprep.subr.mxu0 0.0
    %377 = vmatpush1.msra.mxu0 0.0
    %378 = vmatprep.subr.mxu0 0.0
    %379 = vmatpush1.msra.mxu0 0.0
    %380 = vmatprep.subr.mxu0 0.0
    %381 = vmatpush1.msra.mxu0 0.0
    %382 = vmatprep.subr.mxu0 0.0
    %383 = vmatpush1.msra.mxu0 %v351
    %384 = vmatprep.subr.mxu0 0.0
    %385 = vmatpush1.msra.mxu0 %v350
    %386 = vmatprep.subr.mxu0 0.0
    %387 = vmatpush1.msra.mxu0 %v349
    %388 = vmatprep.subr.mxu0 0.0
    %389 = vmatpush1.msra.mxu0 %v348
    %390 = vmatprep.subr.mxu0 0.0
    %391 = vmatpush1.msra.mxu0 %v347
    %392 = vmatprep.subr.mxu0 0.0
    %393 = vmatpush1.msra.mxu0 %v346
    %394 = vmatprep.subr.mxu0 0.0
    %395 = vmatpush1.msra.mxu0 %v345
    %396 = vmatprep.subr.mxu0 0.0
    %397 = vmatpush1.msra.mxu0 %v344
    %398 = vmatprep.subr.mxu0 0.0
    %399 = vmatpush2.msra.mxu0 0.0
    %400 = vmatprep.subr.mxu0 0.0
    %401 = vmatpush2.msra.mxu0 0.0
    %402 = vmatprep.subr.mxu0 0.0
    %403 = vmatpush2.msra.mxu0 0.0
    %404 = vmatprep.subr.mxu0 0.0
    %405 = vmatpush2.msra.mxu0 0.0
    %406 = vmatprep.subr.mxu0 0.0
    %407 = vmatpush2.msra.mxu0 0.0
    %408 = vmatprep.subr.mxu0 0.0
    %409 = vmatpush2.msra.mxu0 0.0
    %410 = vmatprep.subr.mxu0 0.0
    %411 = vmatpush2.msra.mxu0 0.0
    %412 = vmatprep.subr.mxu0 0.0
    %413 = vmatpush2.msra.mxu0 0.0
    %414 = vmatprep.subr.mxu0 0.0
    %415 = vmatpush2.msra.mxu0 0.0
    %416 = vmatprep.subr.mxu0 0.0
    %417 = vmatpush2.msra.mxu0 0.0
    %418 = vmatprep.subr.mxu0 0.0
    %419 = vmatpush2.msra.mxu0 0.0
    %420 = vmatprep.subr.mxu0 0.0
    %421 = vmatpush2.msra.mxu0 0.0
    %422 = vmatprep.subr.mxu0 0.0
    %423 = vmatpush2.msra.mxu0 0.0
    %424 = vmatprep.subr.mxu0 0.0
    %425 = vmatpush2.msra.mxu0 0.0
    %426 = vmatprep.subr.mxu0 0.0
    %427 = vmatpush2.msra.mxu0 0.0
    %428 = vmatprep.subr.mxu0 0.0
    %429 = vmatpush2.msra.mxu0 0.0
    %430 = vmatprep.mubr.f32.mxu0 0.0
    %431 = vmatmul.mubr.f32.gmra.mxu0 %v361
    %v432 = vpop.f32.mrf.mxu0
    %v433 = vadd.f32 %v357, %v432
    %v434 = vpop.f32.mrf.mxu0
    %435 = vmatprep.mubr.f32.mxu0 0.0
    %436 = vmatmul.mubr.f32.gmra.mxu0 %v364
    %v437 = vpop.f32.mrf.mxu0
    %v438 = vadd.f32 %v357, %v437
    %v439 = vpop.f32.mrf.mxu0
    %440 = vdwg.mxu0
    %vm441 = vcmask 64512
    %442 = vst.msk [vmem:[%s9] sm:$0xff] %vm441, %v433
    %443 = vst.msk [vmem:[%s9 + $0x8] sm:$0xff] %vm441, %v438
    // Predicated region
    $region46: #{tpu_custom_call.1} parent=1 // pred_check
      _
    $region47: #{tpu_custom_call.1} parent=1 // pred_check_branch
      %445 = sbr.rel (0) target = $region49
    $region48: #{tpu_custom_call.1} parent=1 // pred_region
      _
    $region49: #{tpu_custom_call.1} parent=1 // pred_fallthru
      _
    // Predicated region
    $region50: #{tpu_custom_call.1} parent=1 // pred_check
      _
    $region51: #{tpu_custom_call.1} parent=1 // pred_check_branch
      %447 = sbr.rel (0) target = $region53
    $region52: #{tpu_custom_call.1} parent=1 // pred_region
      _
    $region53: #{tpu_custom_call.1} parent=1 // pred_fallthru
      _
    %448 = vsyncpa [#allocation3], 1
    %449 = vsyncpa [#allocation5], 1

</llo_original>
